<compile_context>
chip_gen: v7x
topology: tpu7x:2x2x1
jax: 0.10.0
libtpu: 0.0.40
codegen_flags: <defaults>
</compile_context>

<pallas_src>
import functools

import jax
import jax.numpy as jnp
from jax.experimental import pallas as pl
from jax.experimental.pallas import tpu as pltpu


_BLOCK_BYTES = 4 * 1024 * 1024        # per-buffer payload (f32 bytes)
_VMEM_LIMIT = 32 * 1024 * 1024        # safe on v5e/v6e/v7x
_SMALL_BYTES = 2 * 1024 * 1024        # padded in+out budget for the fast path
_NEG_BIG = -1e30                      # class-pad score (vanishes from softmax)


def _round_up(a, b):
    return (a + b - 1) // b * b


def _cdiv(a, b):
    return (a + b - 1) // b


def _refined_reciprocal(s):
    """EUP reciprocal seed + one Newton step (no VPU divide, ~f32 exact)."""
    inv = pl.reciprocal(s, approx=True)
    return inv * (2.0 - s * inv)


# ----------------------------------------------------------------------------
# Kernels
# ----------------------------------------------------------------------------

def _wp_kernel_segmented(w_ref, x_ref, o_ref, *, num_classes):
    """Lane-segmented softmax in the native row-major layout.

    w_ref: (1, 128)   vector_w tiled 128/num_classes times along lanes
    x_ref: (TR, 128)  each 128-lane row holds 128/num_classes complete samples,
                      each sample occupying num_classes consecutive lanes
    o_ref: (TR, 128)  per-sample softmax of (w * x)
    """
    c = num_classes
    x = x_ref[...].astype(jnp.float32)
    w = w_ref[...].astype(jnp.float32)
    z = x * w

    lane = jax.lax.broadcasted_iota(jnp.int32, (1, 128), 1)

    def seg_allreduce(v, combine):
        # Butterfly all-reduce within each aligned group of `c` lanes.
        s = 1
        while s < c:
            take_upper = (lane % (2 * s)) < s          # partner is at lane + s
            up = pltpu.roll(v, 128 - s, axis=1)        # up[l] = v[(l + s) % 128]
            dn = pltpu.roll(v, s, axis=1)              # dn[l] = v[(l - s) % 128]
            v = combine(v, jnp.where(take_upper, up, dn))
            s *= 2
        return v

    m = seg_allreduce(z, jnp.maximum)                  # per-sample max (stable)
    e = jnp.exp(z - m)                                 # EUP
    t = seg_allreduce(e, jnp.add)                      # per-sample sum
    o_ref[...] = (e * _refined_reciprocal(t)).astype(o_ref.dtype)


def _wp_kernel_row_major(w_ref, x_ref, o_ref):
    """Row-major softmax along the last (class) axis.

    Used for the un-gridded small-problem fast path and for C >= 128.
    w_ref: (1, C); x_ref/o_ref: (TB, C).
    """
    x = x_ref[...].astype(jnp.float32)
    w = w_ref[...].astype(jnp.float32)
    z = x * w
    m = jnp.max(z, axis=-1, keepdims=True)
    e = jnp.exp(z - m)
    s = jnp.sum(e, axis=-1, keepdims=True)
    o_ref[...] = (e * _refined_reciprocal(s)).astype(o_ref.dtype)


# ----------------------------------------------------------------------------
# Wrappers
# ----------------------------------------------------------------------------

def _is_small(B, C):
    lanes = max(_round_up(C, 128), 128)
    subl = max(_round_up(B, 8), 8)
    return subl * lanes * 4 * 2 <= _SMALL_BYTES


def _forward_small(x, w):
    """Single un-gridded call on the whole (B, C) block (latency-bound sizes)."""
    B, C = x.shape
    return pl.pallas_call(
        _wp_kernel_row_major,
        out_shape=jax.ShapeDtypeStruct((B, C), x.dtype),
    )(w.reshape(1, C), x)


def _forward_segmented(x, w, block_rows=None):
    """Lane-dense path for C <= 128: reshape (B, C) -> (R, 128), no transpose."""
    B, C = x.shape

    if 128 % C == 0:
        Cp = C
    else:
        # One-time class pad to the next power of two (<= 128).  Padded scores
        # are very negative, so exp() underflows to 0 and the real-class
        # softmax is untouched; padded columns are sliced off on return.
        Cp = 1 << (C - 1).bit_length()
        x = jnp.pad(x, ((0, 0), (0, Cp - C)), constant_values=_NEG_BIG)
        w = jnp.concatenate([w, jnp.ones((Cp - C,), w.dtype)])

    G = 128 // Cp                       # samples per 128-lane row
    Bp = _round_up(B, G)                # tiny pad (< G rows) only if needed
    if Bp != B:
        x = jnp.pad(x, ((0, Bp - B), (0, 0)))
    R = (Bp * Cp) // 128
    xf = x.reshape(R, 128)              # flat row-major reshape: no data shuffle
    w_row = jnp.tile(jnp.reshape(w, (1, Cp)).astype(jnp.float32), (1, G))

    if block_rows is None:
        cap = max(8, (_BLOCK_BYTES // (128 * 4)) // 8 * 8)
        # Cap so large inputs yield >= 4 grid steps (v7x 2-TC sharding).
        tr = min(cap, max(8, _round_up(_cdiv(R, 4), 8)))
    else:
        tr = block_rows
    assert tr % 8 == 0, "block_rows must be a multiple of 8 (sublane tile)"

    grid = (_cdiv(R, tr),)              # ragged edge block is masked by Pallas
    out = pl.pallas_call(
        functools.partial(_wp_kernel_segmented, num_classes=Cp),
        out_shape=jax.ShapeDtypeStruct((R, 128), x.dtype),
        grid_spec=pltpu.PrefetchScalarGridSpec(
            num_scalar_prefetch=0,
            grid=grid,
            in_specs=[
                pl.BlockSpec((1, 128), lambda i: (0, 0)),     # vector_w (shared)
                pl.BlockSpec((tr, 128), lambda i: (i, 0)),    # row tile
            ],
            out_specs=pl.BlockSpec((tr, 128), lambda i: (i, 0)),
        ),
        compiler_params=pltpu.CompilerParams(
            dimension_semantics=("parallel",),
            vmem_limit_bytes=_VMEM_LIMIT,
        ),
    )(w_row, xf)

    out = out.reshape(Bp, Cp)
    if Bp != B:
        out = out[:B]
    if Cp != C:
        out = out[:, :C]
    return out


def _forward_row_major(x, w, block_rows=None):
    """Row-major path for C >= 128 (classes already lane-dense)."""
    B, C = x.shape
    # NOTE: if C is not a multiple of 128 every row store is masked; if such C
    # occur in practice, pad C once in HBM instead of eating partial stores.
    if block_rows is None:
        lane_c = max(_round_up(C, 128), 128)
        cap = max(8, (_BLOCK_BYTES // (lane_c * 4)) // 8 * 8)
        tb = min(cap, max(8, _round_up(_cdiv(B, 4), 8)))
    else:
        tb = block_rows
    assert tb % 8 == 0, "block_rows must be a multiple of 8 (sublane tile)"

    grid = (_cdiv(B, tb),)              # no batch pad; edge block masked
    return pl.pallas_call(
        _wp_kernel_row_major,
        out_shape=jax.ShapeDtypeStruct((B, C), x.dtype),
        grid_spec=pltpu.PrefetchScalarGridSpec(
            num_scalar_prefetch=0,
            grid=grid,
            in_specs=[
                pl.BlockSpec((1, C), lambda i: (0, 0)),       # vector_w (shared)
                pl.BlockSpec((tb, C), lambda i: (i, 0)),      # batch tile
            ],
            out_specs=pl.BlockSpec((tb, C), lambda i: (i, 0)),
        ),
        compiler_params=pltpu.CompilerParams(
            dimension_semantics=("parallel",),
            vmem_limit_bytes=_VMEM_LIMIT,
        ),
    )(w.reshape(1, C), x)


def multiclass_wp_forward(x, vector_w, *, path="auto", block_rows=None):
    """Pallas TPU forward of multiclass_Working_Point_Fixer:
    softmax(vector_w * x, axis=1).

    x:        (B, C) batch of class scores
    vector_w: (C,)   trainable working-point weights
    path:     "auto" | "small" | "segmented" | "rowmajor" (for testing/tuning)
    """
    B, C = x.shape
    assert vector_w.shape == (C,)

    if path == "auto":
        if _is_small(B, C):
            path = "small"
        elif C < 128:
            path = "segmented"
        else:
            path = "rowmajor"

    if path == "small":
        return _forward_small(x, vector_w)
    if path == "segmented":
        return _forward_segmented(x, vector_w, block_rows)
    return _forward_row_major(x, vector_w, block_rows)


# TODO(synk): fit()/RMSprop optimizer/F1 scoring/plotting are host-side training
# utilities with no Pallas equivalent; only forward() is implemented here.


if __name__ == "__main__":
    key = jax.random.PRNGKey(0)
    k1, k2, k3, k4 = jax.random.split(key, 4)

    # 1) Primary nominal case (small fast path): B=8, C=4, w = ones (module init).
    B, C = 8, 4
    x = jax.random.normal(k1, (B, C), dtype=jnp.float32)
    vector_w = jnp.ones((C,), dtype=jnp.float32)
    out = jax.block_until_ready(multiclass_wp_forward(x, vector_w))
    ref = jax.nn.softmax(vector_w * x, axis=1)
    assert out.shape == (B, C)
    assert jnp.allclose(out, ref, atol=2e-4, rtol=2e-4)

    # 2) Lane-dense segmented path, ragged batch (tiny row pad + masked edge block).
    B2, C2 = 300, 4
    x2 = jax.random.normal(k2, (B2, C2), dtype=jnp.float32)
    w2 = 1.0 + 0.1 * jax.random.normal(k3, (C2,), dtype=jnp.float32)
    out2 = jax.block_until_ready(
        multiclass_wp_forward(x2, w2, path="segmented", block_rows=8))
    ref2 = jax.nn.softmax(w2 * x2, axis=1)
    assert out2.shape == (B2, C2)
    assert jnp.allclose(out2, ref2, atol=2e-4, rtol=2e-4)

    # 3) Segmented path with a class count that does not divide 128 (class pad).
    B3, C3 = 320, 5
    x3 = jax.random.normal(k4, (B3, C3), dtype=jnp.float32)
    w3 = jnp.ones((C3,), dtype=jnp.float32)
    out3 = jax.block_until_ready(
        multiclass_wp_forward(x3, w3, path="segmented", block_rows=8))
    ref3 = jax.nn.softmax(w3 * x3, axis=1)
    assert out3.shape == (B3, C3)
    assert jnp.allclose(out3, ref3, atol=2e-4, rtol=2e-4)

    # 4) Row-major gridded path (class dim already lane-dense).
    B4, C4 = 64, 256
    x4 = jax.random.normal(k1, (B4, C4), dtype=jnp.float32)
    w4 = jnp.ones((C4,), dtype=jnp.float32)
    out4 = jax.block_until_ready(
        multiclass_wp_forward(x4, w4, path="rowmajor", block_rows=16))
    ref4 = jax.nn.softmax(w4 * x4, axis=1)
    assert out4.shape == (B4, C4)
    assert jnp.allclose(out4, ref4, atol=2e-4, rtol=2e-4)

    print("KERNEL_OK")
</pallas_src>

<mosaic_0001>
module attributes {stable_mosaic.version = 11 : i64} {
  func.func @_wp_kernel_row_major(%arg0: memref<1x4xf32, #tpu.memory_space<vmem>>, %arg1: memref<8x4xf32, #tpu.memory_space<vmem>>, %arg2: memref<8x4xf32, #tpu.memory_space<vmem>>) attributes {dimension_semantics = [], scalar_prefetch = 0 : i64, scratch_operands = 0 : i64, tpu.core_type = #tpu.core_type<tc>} {
    %c0 = arith.constant 0 : index
    %c0_0 = arith.constant 0 : index
    %0 = vector.load %arg1[%c0, %c0_0] : memref<8x4xf32, #tpu.memory_space<vmem>>, vector<8x4xf32>
    %c0_1 = arith.constant 0 : index
    %c0_2 = arith.constant 0 : index
    %1 = vector.load %arg0[%c0_1, %c0_2] : memref<1x4xf32, #tpu.memory_space<vmem>>, vector<1x4xf32>
    %2 = vector.broadcast %1 : vector<1x4xf32> to vector<8x4xf32>
    %3 = arith.mulf %0, %2 : vector<8x4xf32>
    %cst = arith.constant dense<0xFF800000> : vector<8xf32>
    %4 = vector.multi_reduction <maximumf>, %3, %cst [1] : vector<8x4xf32> to vector<8xf32>
    %5 = vector.shape_cast %4 : vector<8xf32> to vector<8x1xf32>
    %6 = vector.broadcast %5 : vector<8x1xf32> to vector<8x4xf32>
    %7 = arith.subf %3, %6 : vector<8x4xf32>
    %8 = math.exp %7 : vector<8x4xf32>
    %cst_3 = arith.constant dense<0.000000e+00> : vector<8xf32>
    %9 = vector.multi_reduction <add>, %8, %cst_3 [1] : vector<8x4xf32> to vector<8xf32>
    %10 = vector.shape_cast %9 : vector<8xf32> to vector<8x1xf32>
    %11 = tpu.reciprocal %10 {approx = true} : vector<8x1xf32> -> vector<8x1xf32>
    %12 = arith.mulf %10, %11 : vector<8x1xf32>
    %cst_4 = arith.constant 2.000000e+00 : f32
    %13 = vector.broadcast %cst_4 : f32 to vector<8x1xf32>
    %14 = arith.subf %13, %12 : vector<8x1xf32>
    %15 = arith.mulf %11, %14 : vector<8x1xf32>
    %16 = vector.broadcast %15 : vector<8x1xf32> to vector<8x4xf32>
    %17 = arith.mulf %8, %16 : vector<8x4xf32>
    %c0_5 = arith.constant 0 : index
    %c0_6 = arith.constant 0 : index
    %18 = vector.load %arg2[%c0_5, %c0_6] : memref<8x4xf32, #tpu.memory_space<vmem>>, vector<8x4xf32>
    tpu.vector_store %arg2[%c0_5, %c0_6], %17 {strides = array<i32>} : memref<8x4xf32, #tpu.memory_space<vmem>>, vector<8x4xf32>,
    return
  }
}

</mosaic_0001>

<llo_original>
// kernel: tpu_custom_call.1
$region0: #{tpu_custom_call.1}
  #allocation0 [shape = 'u32[]', space=smem, size = 0x4, offset = 0x4, fixed_abs, tag = 'smem constant byte address 0x4 - core index']
  #allocation1 [shape = 'u32[144,128]{1,0:T(1,128)}', space=vmem, size = 0x12000, scoped, tag = 'internal scratch']
  %s0 = inlined_call_operand.vmem [shape: f32[1,4], index: 0, kind: input, shape index: {}]
  %s1 = inlined_call_operand.vmem [shape: f32[8,4], index: 1, kind: input, shape index: {}]
  %s2 = inlined_call_operand.vmem [shape: f32[8,4], index: 2, kind: output, shape index: {}]
  %s3 = sld [smem:[#allocation0]]
  $region18: #{tpu_custom_call.1} parent=0
    _
  %s5 = ssub.s32 1, %s3
  %s6 = scalar_select 0, %s5, %s3
  // Predicated region
  $region2: #{tpu_custom_call.1} parent=0 // pred_check
    _
  $region3: #{tpu_custom_call.1} parent=0 // pred_check_branch
    %8 = sbr.rel (0) target = $region5
  $region4: #{tpu_custom_call.1} parent=0 // pred_region
    _
  $region5: #{tpu_custom_call.1} parent=0 // pred_fallthru
    _
  // Predicated region
  $region6: #{tpu_custom_call.1} parent=0 // pred_check
    _
  $region7: #{tpu_custom_call.1} parent=0 // pred_check_branch
    %10 = sbr.rel (0) target = $region9
  $region8: #{tpu_custom_call.1} parent=0 // pred_region
    _
  $region9: #{tpu_custom_call.1} parent=0 // pred_fallthru
    _
  %v11 = vld [vmem:[%s1] sm:$0xff]
  %v12 = vld [vmem:[%s0] sm:$0x1]
  %v14 = vlaneseq
  %v15 = vshrl.u32 %v14, 7
  %v16 = vsub.s32 0, %v15
  %v17 = vrot.slane %v12, %v16
  %v19 = vmul.f32 %v11, %v17
  %vm20 = vcmask 31744
  %v21 = vsel %vm20, %v19, -inf
  %22 = vmax.xlane.f32.xlu0 %v21
  %v23 = vpop.xlane.xlu0 %22
  %v24 = vsub.f32 %v19, %v23
  %v25 = vmul.f32 %v24, 1.442695
  %v26 = vpow.pop %v25
  %v27 = vsel %vm20, %v26, 0.0
  %28 = vadd.xlane.f32.xlu0 %v27
  %v29 = vpop.xlane.xlu0 %28
  %v30 = vrcp.pop %v29
  %v31 = vmul.f32 %v29, %v30
  %v32 = vsub.f32 2.0, %v31
  %v33 = vmul.f32 %v30, %v32
  %v34 = vmul.f32 %v26, %v33
  %35 = vst.msk [vmem:[%s2] sm:$0xff] %vm20, %v34
  // Predicated region
  $region10: #{tpu_custom_call.1} parent=0 // pred_check
    _
  $region11: #{tpu_custom_call.1} parent=0 // pred_check_branch
    %37 = sbr.rel (0) target = $region13
  $region12: #{tpu_custom_call.1} parent=0 // pred_region
    _
  $region13: #{tpu_custom_call.1} parent=0 // pred_fallthru
    _
  // Predicated region
  $region14: #{tpu_custom_call.1} parent=0 // pred_check
    _
  $region15: #{tpu_custom_call.1} parent=0 // pred_check_branch
    %39 = sbr.rel (0) target = $region17
  $region16: #{tpu_custom_call.1} parent=0 // pred_region
    _
  $region17: #{tpu_custom_call.1} parent=0 // pred_fallthru
    _

</llo_original>
